<compile_context>
chip_gen: v7x
topology: tpu7x:2x2x1
jax: 0.10.0
libtpu: 0.0.40
codegen_flags: <defaults>
</compile_context>

<pallas_src>
import functools
import math

import jax
import jax.numpy as jnp
import numpy as np
from jax import lax
from jax.experimental import pallas as pl
from jax.experimental.pallas import tpu as pltpu


def _round_up(x, m):
    return (x + m - 1) // m * m


def _vmem_capacity_bytes():
    try:
        return int(pltpu.get_tpu_info().vmem_capacity_bytes)
    except Exception:
        return 64 * 1024 * 1024  # conservative fallback (v7x per-TC VMEM)


def _choose_k_tiling(K, N, hop, in_itemsize, M, tk=None):
    """Pick the K-tile width (lanes) from a VMEM budget, generation aware."""
    need = K + 1  # output has K+1 sub-frame columns
    if tk is None:
        vmem_total = _vmem_capacity_bytes()
        budget = min(vmem_total // 2, 48 * 1024 * 1024)
        # Double-buffered working set: 2*(2 inputs * N*tk + 2 halos * N*128)
        # * itemsize + 2 * hop*tk*4 (output) + weight + slack.
        fixed = (2 * (2 * N * 128 * in_itemsize)
                 + 2 * (2 * hop) * N * in_itemsize + (2 << 20))
        per_tk = 2 * (2 * N * in_itemsize + hop * 4)
        tk = max(128, (budget - fixed) // per_tk)
        tk = min(tk, 4096, _round_up(need, 128))
        tk = (tk // 128) * 128
        # Keep >= 2 parallel grid steps when M == 1 so a 2-TC chip (v7x) gets
        # balanced work (v5e/v6e are single-TC, unaffected).
        if M == 1 and need > 128 and tk >= _round_up(need, 128):
            tk = _round_up(pl.cdiv(need, 2), 128)
    assert tk % 128 == 0 and tk >= 128
    k_pad = _round_up(need, tk)
    return tk, k_pad, k_pad // tk


def decoder_kernel(mw_ref, mask_ref, mwh_ref, maskh_ref, w_ref, out_ref, *, K):
    """One (batch, K-tile) grid step.

    mw_ref, mask_ref   : [1, N, tk]   mixture_w / est_mask tile (native layout)
    mwh_ref, maskh_ref : [1, N, 128]  halo chunk; last lane is frame t*tk - 1
    w_ref              : [L, N]       basis_signals weight (nn.Linear layout)
    out_ref            : [1, hop, tk] overlap-added sub-frames of this tile
    """
    hop = out_ref.shape[1]
    tk = out_ref.shape[2]
    t = pl.program_id(1)

    lane = lax.broadcasted_iota(jnp.int32, (1, tk), 1)
    is_first_lane = lane == 0

    # Ragged-tail masking in-kernel (no wrapper padding).  Use a select, not a
    # multiply, so stale VMEM from the clipped edge DMA cannot propagate.
    valid = (t * tk + lane) < K                                   # [1, tk]
    prod = mw_ref[0] * mask_ref[0]                                # [N, tk]
    prod = jnp.where(valid, prod, jnp.zeros_like(prod))

    w = w_ref[...]
    y = jnp.dot(w, prod, preferred_element_type=jnp.float32)      # [L, tk]
    first = y[:hop, :]                                            # [hop, tk]
    second = y[hop:, :]                                           # [hop, tk]

    # Overlap-add along lanes: out[:, c] = first[:, c] + second[:, c-1].
    shifted = pltpu.roll(second, shift=1, axis=1)                 # col c <- c-1
    shifted = jnp.where(is_first_lane, 0.0, shifted)

    # Cross-tile seam: column 0 of tile t>0 also needs the second half of
    # frame t*tk-1, recomputed from the halo chunk (no extra output / scatter).
    prod_h = mwh_ref[0] * maskh_ref[0]                            # [N, 128]
    y_h = jnp.dot(w, prod_h, preferred_element_type=jnp.float32)  # [L, 128]
    seam = jnp.where(t > 0, y_h[hop:, 127:128], 0.0)              # [hop, 1]

    out = first + shifted + jnp.where(is_first_lane, seam, 0.0)
    out_ref[0] = out.astype(out_ref.dtype)


def decoder_forward(mixture_w, est_mask, weight, *, tk=None):
    """mixture_w, est_mask: [M, N, K]; weight: [L, N] (nn.Linear, no bias)."""
    M, N, K = mixture_w.shape
    L, N_w = weight.shape
    assert N_w == N
    assert L % 2 == 0, "L must be even (frame_step = L // 2)"
    hop = L // 2
    T = (K - 1) * hop + L  # == (K + 1) * hop

    in_sz = jnp.dtype(mixture_w.dtype).itemsize
    tk, K_pad, n_kt = _choose_k_tiling(K, N, hop, in_sz, M, tk=tk)

    # Only for tiny problems (single tile wider than the array) do we pad the
    # inputs; for all real sizes the ragged tail is handled in-kernel.
    if tk > K:
        pad = ((0, 0), (0, 0), (0, tk - K))
        mixture_w = jnp.pad(mixture_w, pad)
        est_mask = jnp.pad(est_mask, pad)

    hblk = tk // 128
    lvb = (K - 1) // tk  # last main-input block containing any valid frame

    main_map = lambda m, t: (m, 0, jnp.minimum(t, lvb))
    halo_map = lambda m, t: (m, 0, jnp.maximum(t * hblk - 1, 0))

    # VMEM limit from the actual working set (never the full physical VMEM).
    vmem_total = _vmem_capacity_bytes()
    ws = ((2 * (2 * N * tk + 2 * N * 128) + 2 * L * N) * in_sz
          + 2 * hop * tk * 4)
    vmem_limit = int(min(max(ws * 5 // 4 + (2 << 20), 32 << 20),
                         vmem_total - (8 << 20)))

    cost = pl.CostEstimate(
        flops=2 * M * N * L * (K_pad + 128 * n_kt) + 2 * M * N * K_pad,
        transcendentals=0,
        bytes_accessed=(2 * M * N * (K_pad + 128 * n_kt) + L * N) * in_sz
        + M * hop * K_pad * 4,
    )

    out_main = pl.pallas_call(
        functools.partial(decoder_kernel, K=K),
        out_shape=jax.ShapeDtypeStruct((M, hop, K_pad), jnp.float32),
        grid=(M, n_kt),
        in_specs=[
            pl.BlockSpec((1, N, tk), main_map),
            pl.BlockSpec((1, N, tk), main_map),
            pl.BlockSpec((1, N, 128), halo_map),
            pl.BlockSpec((1, N, 128), halo_map),
            pl.BlockSpec((L, N), lambda m, t: (0, 0)),
        ],
        out_specs=pl.BlockSpec((1, hop, tk), lambda m, t: (m, 0, t)),
        compiler_params=pltpu.CompilerParams(
            dimension_semantics=("parallel", "parallel"),
            vmem_limit_bytes=vmem_limit,
        ),
        cost_estimate=cost,
    )(mixture_w, est_mask, mixture_w, est_mask, weight)

    # TODO(synk): the final transpose/reshape is one extra XLA pass over the
    # (small, ~hop/N of input volume) output; could be folded in-kernel via an
    # XLU transpose if hop/N were ever non-trivial.
    sub = out_main[:, :, : K + 1]                         # [M, hop, K+1]
    est_source = jnp.transpose(sub, (0, 2, 1)).reshape(M, (K + 1) * hop)
    return est_source[:, :T]                              # T == (K+1)*hop


def decoder_reference(mixture_w, est_mask, weight):
    """Pure-JAX reference mirroring the PyTorch forward (for verification)."""
    est = jnp.transpose(mixture_w * est_mask, (0, 2, 1))  # [M, K, N]
    y = est @ weight.T                                    # [M, K, L]
    M, K, L = y.shape
    hop = L // 2
    T = (K - 1) * hop + L
    idx = (jnp.arange(K)[:, None] * hop + jnp.arange(L)[None, :]).reshape(-1)
    out = jnp.zeros((M, T), dtype=y.dtype)
    out = out.at[:, idx].add(y.reshape(M, K * L))         # overlap_and_add
    return out


if __name__ == "__main__":
    # --- Test 1: small shapes (single K tile), f32 -------------------------
    M, N, K, L = 2, 64, 8, 32
    k1, k2, k3 = jax.random.split(jax.random.PRNGKey(0), 3)
    mixture_w = jax.random.normal(k1, (M, N, K), dtype=jnp.float32)
    est_mask = jax.random.normal(k2, (M, N, K), dtype=jnp.float32)
    bound = 1.0 / math.sqrt(N)          # nn.Linear(N, L, bias=False) init scale
    weight = jax.random.uniform(k3, (L, N), minval=-bound, maxval=bound,
                                dtype=jnp.float32)

    out = jax.block_until_ready(decoder_forward(mixture_w, est_mask, weight))
    ref = decoder_reference(mixture_w, est_mask, weight)
    assert out.shape == (M, (K - 1) * (L // 2) + L)
    np.testing.assert_allclose(np.asarray(out), np.asarray(ref),
                               rtol=2e-5, atol=2e-5)

    # --- Test 2: ragged multi-tile K (in-kernel mask + halo seam), f32 -----
    M2, N2, K2, L2 = 1, 64, 130, 32
    k4, k5, k6 = jax.random.split(jax.random.PRNGKey(1), 3)
    mw2 = jax.random.normal(k4, (M2, N2, K2), dtype=jnp.float32)
    msk2 = jax.random.normal(k5, (M2, N2, K2), dtype=jnp.float32)
    w2 = jax.random.uniform(k6, (L2, N2), minval=-bound, maxval=bound,
                            dtype=jnp.float32)
    out2 = jax.block_until_ready(decoder_forward(mw2, msk2, w2, tk=128))
    ref2 = decoder_reference(mw2, msk2, w2)
    np.testing.assert_allclose(np.asarray(out2), np.asarray(ref2),
                               rtol=2e-5, atol=2e-5)

    # --- Test 2b: K an exact multiple of tk (clamped last tile + seam) -----
    K3 = 256
    k7, k8 = jax.random.split(jax.random.PRNGKey(2), 2)
    mw3 = jax.random.normal(k7, (M2, N2, K3), dtype=jnp.float32)
    msk3 = jax.random.normal(k8, (M2, N2, K3), dtype=jnp.float32)
    out3 = jax.block_until_ready(decoder_forward(mw3, msk3, w2, tk=128))
    ref3 = decoder_reference(mw3, msk3, w2)
    np.testing.assert_allclose(np.asarray(out3), np.asarray(ref3),
                               rtol=2e-5, atol=2e-5)

    # --- Test 3: caller-provided bf16 inputs (no wrapper casts) ------------
    out4 = jax.block_until_ready(
        decoder_forward(mixture_w.astype(jnp.bfloat16),
                        est_mask.astype(jnp.bfloat16),
                        weight.astype(jnp.bfloat16)))
    np.testing.assert_allclose(np.asarray(out4), np.asarray(ref),
                               rtol=5e-2, atol=5e-2)

    print("KERNEL_OK")
</pallas_src>

<mosaic_0001>
module attributes {stable_mosaic.version = 11 : i64} {
  func.func @decoder_kernel(%arg0: i32, %arg1: i32, %arg2: memref<1x64x128xf32, #tpu.memory_space<vmem>>, %arg3: memref<1x64x128xf32, #tpu.memory_space<vmem>>, %arg4: memref<1x64x128xf32, #tpu.memory_space<vmem>>, %arg5: memref<1x64x128xf32, #tpu.memory_space<vmem>>, %arg6: memref<32x64xf32, #tpu.memory_space<vmem>>, %arg7: memref<1x16x128xf32, #tpu.memory_space<vmem>>) attributes {dimension_semantics = [#tpu.dimension_semantics<parallel>, #tpu.dimension_semantics<parallel>], iteration_bounds = array<i64: 2, 1>, scalar_prefetch = 0 : i64, scratch_operands = 0 : i64, tpu.core_type = #tpu.core_type<tc>, window_params = [{transform_indices = @transform_0, window_bounds = array<i64: 1, 64, 128>}, {transform_indices = @transform_1, window_bounds = array<i64: 1, 64, 128>}, {transform_indices = @transform_2, window_bounds = array<i64: 1, 64, 128>}, {transform_indices = @transform_3, window_bounds = array<i64: 1, 64, 128>}, {pipeline_mode = #tpu.pipeline_mode<synchronous>, transform_indices = @transform_4, window_bounds = array<i64: 32, 64>}, {transform_indices = @transform_5, window_bounds = array<i64: 1, 16, 128>}]} {
    %0 = tpu.iota {dimensions = array<i32: 1>} : vector<1x128xi32>
    %c0_i32 = arith.constant 0 : i32
    %1 = vector.broadcast %c0_i32 : i32 to vector<1x128xi32>
    %2 = arith.cmpi eq, %0, %1 : vector<1x128xi32>
    %c128_i32 = arith.constant 128 : i32
    %3 = arith.muli %arg1, %c128_i32 : i32
    %4 = vector.broadcast %3 : i32 to vector<1x128xi32>
    %5 = arith.addi %4, %0 : vector<1x128xi32>
    %c8_i32 = arith.constant 8 : i32
    %6 = vector.broadcast %c8_i32 : i32 to vector<1x128xi32>
    %7 = arith.cmpi slt, %5, %6 : vector<1x128xi32>
    %c0 = arith.constant 0 : index
    %c0_0 = arith.constant 0 : index
    %c0_1 = arith.constant 0 : index
    %8 = vector.load %arg2[%c0, %c0_0, %c0_1] : memref<1x64x128xf32, #tpu.memory_space<vmem>>, vector<1x64x128xf32>
    %9 = vector.shape_cast %8 : vector<1x64x128xf32> to vector<64x128xf32>
    %c0_2 = arith.constant 0 : index
    %c0_3 = arith.constant 0 : index
    %c0_4 = arith.constant 0 : index
    %10 = vector.load %arg3[%c0_2, %c0_3, %c0_4] : memref<1x64x128xf32, #tpu.memory_space<vmem>>, vector<1x64x128xf32>
    %11 = vector.shape_cast %10 : vector<1x64x128xf32> to vector<64x128xf32>
    %12 = arith.mulf %9, %11 : vector<64x128xf32>
    %cst = arith.constant 0.000000e+00 : f32
    %13 = vector.broadcast %cst : f32 to vector<64x128xf32>
    %14 = vector.shape_cast %7 : vector<1x128xi1> to vector<1x128xi1>
    %15 = vector.broadcast %14 : vector<1x128xi1> to vector<64x128xi1>
    %16 = arith.select %15, %12, %13 : vector<64x128xi1>, vector<64x128xf32>
    %c0_5 = arith.constant 0 : index
    %c0_6 = arith.constant 0 : index
    %17 = vector.load %arg6[%c0_5, %c0_6] : memref<32x64xf32, #tpu.memory_space<vmem>>, vector<32x64xf32>
    %cst_7 = arith.constant dense<0.000000e+00> : vector<32x128xf32>
    %18 = tpu.matmul %17, %16, %cst_7 {dimension_numbers = #tpu.dot_dimension_numbers<[1], [0], [0], [1], [0, 0, 1, 1], [], []>} : vector<32x64xf32>, vector<64x128xf32>, vector<32x128xf32> -> vector<32x128xf32>
    %19 = vector.extract_strided_slice %18 {offsets = [0, 0], sizes = [16, 128], strides = [1, 1]} : vector<32x128xf32> to vector<16x128xf32>
    %20 = vector.extract_strided_slice %18 {offsets = [16, 0], sizes = [16, 128], strides = [1, 1]} : vector<32x128xf32> to vector<16x128xf32>
    %c1_i32 = arith.constant 1 : i32
    %21 = tpu.dynamic_rotate %20 by %c1_i32 dim 1 : vector<16x128xf32>, i32 -> vector<16x128xf32>
    %cst_8 = arith.constant 0.000000e+00 : f32
    %22 = vector.shape_cast %2 : vector<1x128xi1> to vector<1x128xi1>
    %23 = vector.broadcast %22 : vector<1x128xi1> to vector<16x128xi1>
    %24 = vector.broadcast %cst_8 : f32 to vector<16x128xf32>
    %25 = arith.select %23, %24, %21 : vector<16x128xi1>, vector<16x128xf32>
    %c0_9 = arith.constant 0 : index
    %c0_10 = arith.constant 0 : index
    %c0_11 = arith.constant 0 : index
    %26 = vector.load %arg4[%c0_9, %c0_10, %c0_11] : memref<1x64x128xf32, #tpu.memory_space<vmem>>, vector<1x64x128xf32>
    %27 = vector.shape_cast %26 : vector<1x64x128xf32> to vector<64x128xf32>
    %c0_12 = arith.constant 0 : index
    %c0_13 = arith.constant 0 : index
    %c0_14 = arith.constant 0 : index
    %28 = vector.load %arg5[%c0_12, %c0_13, %c0_14] : memref<1x64x128xf32, #tpu.memory_space<vmem>>, vector<1x64x128xf32>
    %29 = vector.shape_cast %28 : vector<1x64x128xf32> to vector<64x128xf32>
    %30 = arith.mulf %27, %29 : vector<64x128xf32>
    %cst_15 = arith.constant dense<0.000000e+00> : vector<32x128xf32>
    %31 = tpu.matmul %17, %30, %cst_15 {dimension_numbers = #tpu.dot_dimension_numbers<[1], [0], [0], [1], [0, 0, 1, 1], [], []>} : vector<32x64xf32>, vector<64x128xf32>, vector<32x128xf32> -> vector<32x128xf32>
    %c0_i32_16 = arith.constant 0 : i32
    %32 = arith.cmpi sgt, %arg1, %c0_i32_16 : i32
    %33 = vector.extract_strided_slice %31 {offsets = [16, 127], sizes = [16, 1], strides = [1, 1]} : vector<32x128xf32> to vector<16x1xf32>
    %cst_17 = arith.constant 0.000000e+00 : f32
    %34 = vector.broadcast %cst_17 : f32 to vector<16x1xf32>
    %35 = arith.select %32, %33, %34 : vector<16x1xf32>
    %36 = arith.addf %19, %25 : vector<16x128xf32>
    %cst_18 = arith.constant 0.000000e+00 : f32
    %37 = vector.shape_cast %2 : vector<1x128xi1> to vector<1x128xi1>
    %38 = vector.broadcast %37 : vector<1x128xi1> to vector<16x128xi1>
    %39 = vector.shape_cast %35 : vector<16x1xf32> to vector<16x1xf32>
    %40 = vector.broadcast %39 : vector<16x1xf32> to vector<16x128xf32>
    %41 = vector.broadcast %cst_18 : f32 to vector<16x128xf32>
    %42 = arith.select %38, %40, %41 : vector<16x128xi1>, vector<16x128xf32>
    %43 = arith.addf %36, %42 : vector<16x128xf32>
    %c0_19 = arith.constant 0 : index
    %c0_20 = arith.constant 0 : index
    %c0_21 = arith.constant 0 : index
    %44 = vector.load %arg7[%c0_19, %c0_20, %c0_21] : memref<1x16x128xf32, #tpu.memory_space<vmem>>, vector<1x16x128xf32>
    %45 = vector.shape_cast %44 : vector<1x16x128xf32> to vector<16x128xf32>
    %46 = vector.shape_cast %43 : vector<16x128xf32> to vector<1x16x128xf32>
    tpu.vector_store %arg7[%c0_19, %c0_20, %c0_21], %46 {strides = array<i32>} : memref<1x16x128xf32, #tpu.memory_space<vmem>>, vector<1x16x128xf32>,
    return
  }
  func.func @transform_0(%arg0: i32, %arg1: i32) -> (i32, i32, i32) {
    %c0_i32 = arith.constant 0 : i32
    %0 = arith.minsi %arg1, %c0_i32 : i32
    %c0_i32_0 = arith.constant 0 : i32
    %c0_i32_1 = arith.constant 0 : i32
    return %arg0, %c0_i32_0, %0 : i32, i32, i32
  }
  func.func @transform_1(%arg0: i32, %arg1: i32) -> (i32, i32, i32) {
    %c0_i32 = arith.constant 0 : i32
    %0 = arith.minsi %arg1, %c0_i32 : i32
    %c0_i32_0 = arith.constant 0 : i32
    %c0_i32_1 = arith.constant 0 : i32
    return %arg0, %c0_i32_0, %0 : i32, i32, i32
  }
  func.func @transform_2(%arg0: i32, %arg1: i32) -> (i32, i32, i32) {
    %c1_i32 = arith.constant 1 : i32
    %0 = arith.muli %arg1, %c1_i32 : i32
    %c1_i32_0 = arith.constant 1 : i32
    %1 = arith.subi %0, %c1_i32_0 : i32
    %c0_i32 = arith.constant 0 : i32
    %2 = arith.maxsi %1, %c0_i32 : i32
    %c0_i32_1 = arith.constant 0 : i32
    %c0_i32_2 = arith.constant 0 : i32
    return %arg0, %c0_i32_1, %2 : i32, i32, i32
  }
  func.func @transform_3(%arg0: i32, %arg1: i32) -> (i32, i32, i32) {
    %c1_i32 = arith.constant 1 : i32
    %0 = arith.muli %arg1, %c1_i32 : i32
    %c1_i32_0 = arith.constant 1 : i32
    %1 = arith.subi %0, %c1_i32_0 : i32
    %c0_i32 = arith.constant 0 : i32
    %2 = arith.maxsi %1, %c0_i32 : i32
    %c0_i32_1 = arith.constant 0 : i32
    %c0_i32_2 = arith.constant 0 : i32
    return %arg0, %c0_i32_1, %2 : i32, i32, i32
  }
  func.func @transform_4(%arg0: i32, %arg1: i32) -> (i32, i32) {
    %c0_i32 = arith.constant 0 : i32
    %c0_i32_0 = arith.constant 0 : i32
    %c0_i32_1 = arith.constant 0 : i32
    return %c0_i32, %c0_i32_0 : i32, i32
  }
  func.func @transform_5(%arg0: i32, %arg1: i32) -> (i32, i32, i32) {
    %c0_i32 = arith.constant 0 : i32
    %c0_i32_0 = arith.constant 0 : i32
    return %arg0, %c0_i32, %arg1 : i32, i32, i32
  }
}

</mosaic_0001>

<llo_original>
// kernel: tpu_custom_call.1
$region0: #{tpu_custom_call.1}
  #allocation0 [shape = 'u32[]', space=smem, size = 0x4, offset = 0x4, fixed_abs, tag = 'smem constant byte address 0x4 - core index']
  #allocation1 [shape = 'u32[144,128]{1,0:T(1,128)}', space=vmem, size = 0x12000, scoped, tag = 'internal scratch']
  %s0 = inlined_call_operand.hbm [shape: f32[2,64,128], index: 0, kind: input, shape index: {}]
  %s1 = inlined_call_operand.hbm [shape: f32[2,64,128], index: 1, kind: input, shape index: {}]
  %s2 = inlined_call_operand.hbm [shape: f32[2,64,128], index: 2, kind: input, shape index: {}]
  %s3 = inlined_call_operand.hbm [shape: f32[2,64,128], index: 3, kind: input, shape index: {}]
  %s4 = inlined_call_operand.hbm [shape: f32[32,64], index: 4, kind: input, shape index: {}]
  %s5 = inlined_call_operand.hbm [shape: f32[2,16,128], index: 5, kind: output, shape index: {}]
  %s6 = sld [smem:[#allocation0]]
  $region73: #{tpu_custom_call.1} parent=0
    _
  %s8 = ssub.s32 1, %s6
  %s9 = scalar_select 0, %s8, %s6
  $region1: #{tpu_custom_call.1} parent=0
    #allocation2 [shape = 'u8[65536]{0}', space=vmem, size = 0x10000, scoped, tag = 'input window, operand 0']
    #allocation3 [shape = 's32[2]{0}', space=sflag, size = 0x8, scoped, tag = 'scoped memory for tpu_custom_call.1']
    #allocation4 [shape = 's32[2]{0}', space=sflag, size = 0x8, scoped, tag = 'scoped memory for tpu_custom_call.1']
    #allocation5 [shape = 'u8[65536]{0}', space=vmem, size = 0x10000, scoped, tag = 'input window, operand 1']
    #allocation6 [shape = 's32[2]{0}', space=sflag, size = 0x8, scoped, tag = 'scoped memory for tpu_custom_call.1']
    #allocation7 [shape = 'u8[65536]{0}', space=vmem, size = 0x10000, scoped, tag = 'input window, operand 2']
    #allocation8 [shape = 'u8[65536]{0}', space=vmem, size = 0x10000, scoped, tag = 'input window, operand 3']
    #allocation9 [shape = 's32[2]{0}', space=sflag, size = 0x8, scoped, tag = 'scoped memory for tpu_custom_call.1']
    #allocation10 [shape = 'u8[16384]{0}', space=vmem, size = 0x4000, scoped, tag = 'input window, operand 4, single buffered']
    #allocation11 [shape = 'u8[16384]{0}', space=vmem, size = 0x4000, scoped, tag = 'output window, operand 0']
    %10 = vsyncpa [#allocation3], 0
    %s11 = scalar_lea.sflag [#allocation3], 1
    %12 = vsyncpa %s11, 0
    %13 = vsyncpa [#allocation6], 0
    %s14 = scalar_lea.sflag [#allocation6], 1
    %15 = vsyncpa %s14, 0
    %16 = vsyncpa [#allocation9], 0
    %s17 = scalar_lea.sflag [#allocation9], 1
    %18 = vsyncpa %s17, 0
    %19 = vsyncpa [#allocation4], 0
    %s20 = scalar_lea.sflag [#allocation4], 1
    %21 = vsyncpa %s20, 0
    loop: start=0, step=1, limit=4
    $region2: #{tpu_custom_call.1} parent=1 // loop_pre_header
      _
    $region3: #{tpu_custom_call.1} parent=1 // loop_header
      %s23 = sphi 0, %s27
      %p24 = scmp.ge.s32.totalorder %s23, 4
      %s30 = sphi 0, %s42
      %s31 = sphi 0, %s38
      %s32 = sphi 0, %s30
      %s33 = sphi 0, %s31
      %s34 = sphi 0, %s32
      %s35 = sphi 0, %s33
      %s51 = sphi 0, %s53
      %s54 = sphi 0, %s51
      %s55 = sphi 0, %s54
      %s71 = sphi 0, %s55
      %s83 = sphi 0, %s85
      %s86 = sphi 0, %s83
      %s87 = sphi 0, %s86
      %s103 = sphi 0, %s87
      %s117 = sphi 0, %s119
      %s120 = sphi 0, %s117
      %s121 = sphi 0, %s120
      %s137 = sphi 0, %s121
      %s151 = sphi 0, %s153
      %s154 = sphi 0, %s151
      %s155 = sphi 0, %s154
      %s171 = sphi 0, %s155
      %s175 = sphi 0, %s175
      %s177 = sphi 0, %s175
      %s178 = sphi 0, %s177
      %s192 = sphi 0, %s178
      %s200 = sphi 0, %s202
      %s203 = sphi 0, %s200
      %s204 = sphi 0, %s203
      %s220 = sphi 0, %s204
    $region4: #{tpu_custom_call.1} parent=1 // loop_header_branch
      %26 = sbr.rel (%p24) target = $region8
    $region5: #{tpu_custom_call.1} parent=1 // loop_body
      %s28 = ssub.s32 %s23, 1
      %s29 = ssub.s32 %s23, 2
      %s36 = sadd.s32 1, %s31
      %p37 = scmp.ge.s32.totalorder %s36, 1
      %s38 = scalar_select %p37, 0, %s36
      %s39 = sadd.s32 1, %s30
      %s40 = scalar_select %p37, %s39, %s30
      %p41 = scmp.ge.s32.totalorder %s40, 2
      %s42 = scalar_select %p41, 0, %s40
      %p43 = scmp.lt.s32.totalorder %s31, 0
      %s44 = scalar_select %p43, %s31, 0
      %p45 = scmp.lt.s32.totalorder %s38, 0
      %s46 = scalar_select %p45, %s38, 0
      %s47 = ssub.s32 %s30, %s42
      %s48 = ssub.s32 %s44, %s46
      %s49 = sor.u32 %s47, %s48
      %p50 = scmp.eq.s32.totalorder %s49, 0
      %s52 = sadd.s32 %s51, 1
      %s53 = scalar_select %p50, %s51, %s52
      %p56 = pneg %p50
      %p57 = scmp.eq.s32.totalorder %s23, 1
      %p58 = por %p56, %p57
      %p59 = scmp.ne.s32.totalorder %s51, %s54
      %p60 = scmp.eq.s32.totalorder %s23, 0
      %p61 = por %p59, %p60
      %p62 = scmp.ne.s32.totalorder %s51, %s54
      %p63 = scmp.eq.s32.totalorder %s28, 1
      %p64 = por %p62, %p63
      %p65 = scmp.ne.s32.totalorder %s54, %s55
      %p66 = scmp.eq.s32.totalorder %s28, 0
      %p67 = por %p65, %p66
      %p68 = scmp.ne.s32.totalorder %s54, %s55
      %p69 = scmp.eq.s32.totalorder %s29, 1
      %p70 = por %p68, %p69
      %p72 = scmp.ne.s32.totalorder %s55, %s71
      %p73 = scmp.eq.s32.totalorder %s29, 0
      %p74 = por %p72, %p73
      %p75 = scmp.lt.s32.totalorder %s31, 0
      %s76 = scalar_select %p75, %s31, 0
      %p77 = scmp.lt.s32.totalorder %s38, 0
      %s78 = scalar_select %p77, %s38, 0
      %s79 = ssub.s32 %s30, %s42
      %s80 = ssub.s32 %s76, %s78
      %s81 = sor.u32 %s79, %s80
      %p82 = scmp.eq.s32.totalorder %s81, 0
      %s84 = sadd.s32 %s83, 1
      %s85 = scalar_select %p82, %s83, %s84
      %p88 = pneg %p82
      %p89 = scmp.eq.s32.totalorder %s23, 1
      %p90 = por %p88, %p89
      %p91 = scmp.ne.s32.totalorder %s83, %s86
      %p92 = scmp.eq.s32.totalorder %s23, 0
      %p93 = por %p91, %p92
      %p94 = scmp.ne.s32.totalorder %s83, %s86
      %p95 = scmp.eq.s32.totalorder %s28, 1
      %p96 = por %p94, %p95
      %p97 = scmp.ne.s32.totalorder %s86, %s87
      %p98 = scmp.eq.s32.totalorder %s28, 0
      %p99 = por %p97, %p98
      %p100 = scmp.ne.s32.totalorder %s86, %s87
      %p101 = scmp.eq.s32.totalorder %s29, 1
      %p102 = por %p100, %p101
      %p104 = scmp.ne.s32.totalorder %s87, %s103
      %p105 = scmp.eq.s32.totalorder %s29, 0
      %p106 = por %p104, %p105
      %s107 = ssub.s32 %s31, 1
      %p108 = scmp.gt.s32.totalorder %s107, 0
      %s109 = scalar_select %p108, %s107, 0
      %s110 = ssub.s32 %s38, 1
      %p111 = scmp.gt.s32.totalorder %s110, 0
      %s112 = scalar_select %p111, %s110, 0
      %s113 = ssub.s32 %s30, %s42
      %s114 = ssub.s32 %s109, %s112
      %s115 = sor.u32 %s113, %s114
      %p116 = scmp.eq.s32.totalorder %s115, 0
      %s118 = sadd.s32 %s117, 1
      %s119 = scalar_select %p116, %s117, %s118
      %p122 = pneg %p116
      %p123 = scmp.eq.s32.totalorder %s23, 1
      %p124 = por %p122, %p123
      %p125 = scmp.ne.s32.totalorder %s117, %s120
      %p126 = scmp.eq.s32.totalorder %s23, 0
      %p127 = por %p125, %p126
      %p128 = scmp.ne.s32.totalorder %s117, %s120
      %p129 = scmp.eq.s32.totalorder %s28, 1
      %p130 = por %p128, %p129
      %p131 = scmp.ne.s32.totalorder %s120, %s121
      %p132 = scmp.eq.s32.totalorder %s28, 0
      %p133 = por %p131, %p132
      %p134 = scmp.ne.s32.totalorder %s120, %s121
      %p135 = scmp.eq.s32.totalorder %s29, 1
      %p136 = por %p134, %p135
      %p138 = scmp.ne.s32.totalorder %s121, %s137
      %p139 = scmp.eq.s32.totalorder %s29, 0
      %p140 = por %p138, %p139
      %s141 = ssub.s32 %s31, 1
      %p142 = scmp.gt.s32.totalorder %s141, 0
      %s143 = scalar_select %p142, %s141, 0
      %s144 = ssub.s32 %s38, 1
      %p145 = scmp.gt.s32.totalorder %s144, 0
      %s146 = scalar_select %p145, %s144, 0
      %s147 = ssub.s32 %s30, %s42
      %s148 = ssub.s32 %s143, %s146
      %s149 = sor.u32 %s147, %s148
      %p150 = scmp.eq.s32.totalorder %s149, 0
      %s152 = sadd.s32 %s151, 1
      %s153 = scalar_select %p150, %s151, %s152
      %p156 = pneg %p150
      %p157 = scmp.eq.s32.totalorder %s23, 1
      %p158 = por %p156, %p157
      %p159 = scmp.ne.s32.totalorder %s151, %s154
      %p160 = scmp.eq.s32.totalorder %s23, 0
      %p161 = por %p159, %p160
      %p162 = scmp.ne.s32.totalorder %s151, %s154
      %p163 = scmp.eq.s32.totalorder %s28, 1
      %p164 = por %p162, %p163
      %p165 = scmp.ne.s32.totalorder %s154, %s155
      %p166 = scmp.eq.s32.totalorder %s28, 0
      %p167 = por %p165, %p166
      %p168 = scmp.ne.s32.totalorder %s154, %s155
      %p169 = scmp.eq.s32.totalorder %s29, 1
      %p170 = por %p168, %p169
      %p172 = scmp.ne.s32.totalorder %s155, %s171
      %p173 = scmp.eq.s32.totalorder %s29, 0
      %p174 = por %p172, %p173
      %s176 = sadd.s32 %s175, 1
      %p179 = scmp.eq.s32.totalorder %s23, 1
      %p180 = scmp.ne.s32.totalorder %s175, %s177
      %p181 = scmp.eq.s32.totalorder %s23, 0
      %p182 = por %p180, %p181
      %p183 = scmp.ne.s32.totalorder %s175, %s177
      %p184 = scmp.eq.s32.totalorder %s28, 1
      %p185 = por %p183, %p184
      %p186 = scmp.ne.s32.totalorder %s177, %s178
      %p187 = scmp.eq.s32.totalorder %s28, 0
      %p188 = por %p186, %p187
      %p189 = scmp.ne.s32.totalorder %s177, %s178
      %p190 = scmp.eq.s32.totalorder %s29, 1
      %p191 = por %p189, %p190
      %p193 = scmp.ne.s32.totalorder %s178, %s192
      %p194 = scmp.eq.s32.totalorder %s29, 0
      %p195 = por %p193, %p194
      %s196 = ssub.s32 %s30, %s42
      %s197 = ssub.s32 %s31, %s38
      %s198 = sor.u32 %s196, %s197
      %p199 = scmp.eq.s32.totalorder %s198, 0
      %s201 = sadd.s32 %s200, 1
      %s202 = scalar_select %p199, %s200, %s201
      %p205 = pneg %p199
      %p206 = scmp.eq.s32.totalorder %s23, 1
      %p207 = por %p205, %p206
      %p208 = scmp.ne.s32.totalorder %s200, %s203
      %p209 = scmp.eq.s32.totalorder %s23, 0
      %p210 = por %p208, %p209
      %p211 = scmp.ne.s32.totalorder %s200, %s203
      %p212 = scmp.eq.s32.totalorder %s28, 1
      %p213 = por %p211, %p212
      %p214 = scmp.ne.s32.totalorder %s203, %s204
      %p215 = scmp.eq.s32.totalorder %s28, 0
      %p216 = por %p214, %p215
      %p217 = scmp.ne.s32.totalorder %s203, %s204
      %p218 = scmp.eq.s32.totalorder %s29, 1
      %p219 = por %p217, %p218
      %p221 = scmp.ne.s32.totalorder %s204, %s220
      %p222 = scmp.eq.s32.totalorder %s29, 0
      %p223 = por %p221, %p222
      %p224 = scmp.le.s32.totalorder 1, %s23
      %p225 = scmp.lt.s32.totalorder %s23, 3
      %p226 = pnand %p224, %p225
      %p227 = pneg %p226
      // Predicated region
      $region9: #{tpu_custom_call.1} parent=5 // pred_check
        _
      $region10: #{tpu_custom_call.1} parent=5 // pred_check_branch
        %229 = sbr.rel (%p226) target = $region12
      $region11: #{tpu_custom_call.1} parent=5 // pred_region
        %s230 = ssub.s32 %s23, 1
        // Predicated region
        $region13: #{tpu_custom_call.1} parent=11 // pred_check
          %p231 = pneg %p188
        $region14: #{tpu_custom_call.1} parent=11 // pred_check_branch
          %233 = sbr.rel (%p231) target = $region16
        $region15: #{tpu_custom_call.1} parent=11 // pred_region
          %s235 = ssub.s32 512, 512
          %236 = vsyncadd [#allocation9], %s235
          %s237 = sshll.u32 [#allocation10], 4
          %s238 = int_to_ptr.vmem [resolvable:$true] %s237
          %243 = dma.hbm_to_vmem [thread:$0]  %s4, 512, %s238, [#allocation9], 128, 128, 8
        $region16: #{tpu_custom_call.1} parent=11 // pred_fallthru
          _
      $region12: #{tpu_custom_call.1} parent=5 // pred_fallthru
        _
      %p244 = scmp.lt.s32.totalorder %s23, 2
      // Predicated region
      $region17: #{tpu_custom_call.1} parent=5 // pred_check
        %p245 = pneg %p244
      $region18: #{tpu_custom_call.1} parent=5 // pred_check_branch
        %247 = sbr.rel (%p245) target = $region20
      $region19: #{tpu_custom_call.1} parent=5 // pred_region
        // Predicated region
        $region21: #{tpu_custom_call.1} parent=19 // pred_check
          %p248 = pneg %p61
        $region22: #{tpu_custom_call.1} parent=19 // pred_check_branch
          %250 = sbr.rel (%p248) target = $region24
        $region23: #{tpu_custom_call.1} parent=19 // pred_region
          %s251 = sand.u32 %s51, 1
          %s252 = scalar_lea.sflag [#allocation3], %s251
          %s253 = sand.u32 %s51, 1
          %s254 = smul.addr %s253, 64
          %s255 = scalar_lea.vmem [#allocation2], %s254
          %p256 = scmp.lt.s32.totalorder %s31, 0
          %s257 = scalar_select %p256, %s31, 0
          %s259 = ssub.s32 1024, 1024
          %260 = vsyncadd %s252, %s259
          %s261 = smul.addr %s30, 8
          %s262 = sadd.s32 %s257, %s261
          %s263 = smul.addr %s262, 128
          %s264 = scalar_lea.hbm %s0, %s263
          %s265 = sshll.u32 %s255, 4
          %s266 = int_to_ptr.vmem [resolvable:$true] %s265
          %271 = dma.hbm_to_vmem [thread:$0]  %s264, 1024, %s266, %s252, 128, 128, 8
        $region24: #{tpu_custom_call.1} parent=19 // pred_fallthru
          _
        // Predicated region
        $region25: #{tpu_custom_call.1} parent=19 // pred_check
          %p272 = pneg %p93
        $region26: #{tpu_custom_call.1} parent=19 // pred_check_branch
          %274 = sbr.rel (%p272) target = $region28
        $region27: #{tpu_custom_call.1} parent=19 // pred_region
          %s275 = sand.u32 %s23, 1
          %s276 = scalar_lea.sflag [#allocation6], %s275
          %s277 = sand.u32 %s83, 1
          %s278 = smul.addr %s277, 64
          %s279 = scalar_lea.vmem [#allocation5], %s278
          %p280 = scmp.lt.s32.totalorder %s31, 0
          %s281 = scalar_select %p280, %s31, 0
          %s283 = ssub.s32 1024, 1024
          %284 = vsyncadd %s276, %s283
          %s285 = smul.addr %s30, 8
          %s286 = sadd.s32 %s281, %s285
          %s287 = smul.addr %s286, 128
          %s288 = scalar_lea.hbm %s1, %s287
          %s289 = sshll.u32 %s279, 4
          %s290 = int_to_ptr.vmem [resolvable:$true] %s289
          %295 = dma.hbm_to_vmem [thread:$0]  %s288, 1024, %s290, %s276, 128, 128, 8
        $region28: #{tpu_custom_call.1} parent=19 // pred_fallthru
          _
        // Predicated region
        $region29: #{tpu_custom_call.1} parent=19 // pred_check
          %p296 = pneg %p127
        $region30: #{tpu_custom_call.1} parent=19 // pred_check_branch
          %298 = sbr.rel (%p296) target = $region32
        $region31: #{tpu_custom_call.1} parent=19 // pred_region
          %s299 = sand.u32 %s23, 1
          %s300 = scalar_lea.sflag [#allocation6], %s299
          %s301 = sand.u32 %s117, 1
          %s302 = smul.addr %s301, 64
          %s303 = scalar_lea.vmem [#allocation7], %s302
          %s304 = ssub.s32 %s31, 1
          %p305 = scmp.gt.s32.totalorder %s304, 0
          %s306 = scalar_select %p305, %s304, 0
          %s308 = ssub.s32 1024, 1024
          %309 = vsyncadd %s300, %s308
          %s310 = smul.addr %s30, 8
          %s311 = sadd.s32 %s306, %s310
          %s312 = smul.addr %s311, 128
          %s313 = scalar_lea.hbm %s2, %s312
          %s314 = sshll.u32 %s303, 4
          %s315 = int_to_ptr.vmem [resolvable:$true] %s314
          %320 = dma.hbm_to_vmem [thread:$0]  %s313, 1024, %s315, %s300, 128, 128, 8
        $region32: #{tpu_custom_call.1} parent=19 // pred_fallthru
          _
        // Predicated region
        $region33: #{tpu_custom_call.1} parent=19 // pred_check
          %p321 = pneg %p161
        $region34: #{tpu_custom_call.1} parent=19 // pred_check_branch
          %323 = sbr.rel (%p321) target = $region36
        $region35: #{tpu_custom_call.1} parent=19 // pred_region
          %s324 = sand.u32 %s23, 1
          %s325 = scalar_lea.sflag [#allocation9], %s324
          %s326 = sand.u32 %s151, 1
          %s327 = smul.addr %s326, 64
          %s328 = scalar_lea.vmem [#allocation8], %s327
          %s329 = ssub.s32 %s31, 1
          %p330 = scmp.gt.s32.totalorder %s329, 0
          %s331 = scalar_select %p330, %s329, 0
          %s333 = ssub.s32 1024, 1024
          %334 = vsyncadd %s325, %s333
          %s335 = smul.addr %s30, 8
          %s336 = sadd.s32 %s331, %s335
          %s337 = smul.addr %s336, 128
          %s338 = scalar_lea.hbm %s3, %s337
          %s339 = sshll.u32 %s328, 4
          %s340 = int_to_ptr.vmem [resolvable:$true] %s339
          %345 = dma.hbm_to_vmem [thread:$0]  %s338, 1024, %s340, %s325, 128, 128, 8
        $region36: #{tpu_custom_call.1} parent=19 // pred_fallthru
          _
      $region20: #{tpu_custom_call.1} parent=5 // pred_fallthru
        _
      %p346 = scmp.le.s32.totalorder 1, %s23
      %p347 = scmp.lt.s32.totalorder %s23, 3
      %p348 = pnand %p346, %p347
      %p349 = pneg %p348
      // Predicated region
      $region37: #{tpu_custom_call.1} parent=5 // pred_check
        _
      $region38: #{tpu_custom_call.1} parent=5 // pred_check_branch
        %351 = sbr.rel (%p348) target = $region40
      $region39: #{tpu_custom_call.1} parent=5 // pred_region
        %s352 = ssub.s32 %s23, 1
        %s353 = sand.u32 %s54, 1
        %s354 = scalar_lea.sflag [#allocation3], %s353
        %s355 = sand.u32 %s54, 1
        %s356 = smul.addr %s355, 64
        %s357 = scalar_lea.vmem [#allocation2], %s356
        // Predicated region
        $region41: #{tpu_custom_call.1} parent=39 // pred_check
          %p358 = pneg %p67
        $region42: #{tpu_custom_call.1} parent=39 // pred_check_branch
          %360 = sbr.rel (%p358) target = $region44
        $region43: #{tpu_custom_call.1} parent=39 // pred_region
          %361 = dma.done %s354, 1024
        $region44: #{tpu_custom_call.1} parent=39 // pred_fallthru
          _
        %s362 = sand.u32 %s28, 1
        %s363 = scalar_lea.sflag [#allocation6], %s362
        %s364 = sand.u32 %s86, 1
        %s365 = smul.addr %s364, 64
        %s366 = scalar_lea.vmem [#allocation5], %s365
        // Predicated region
        $region45: #{tpu_custom_call.1} parent=39 // pred_check
          %p367 = pneg %p99
        $region46: #{tpu_custom_call.1} parent=39 // pred_check_branch
          %369 = sbr.rel (%p367) target = $region48
        $region47: #{tpu_custom_call.1} parent=39 // pred_region
          %370 = dma.done %s363, 1024
        $region48: #{tpu_custom_call.1} parent=39 // pred_fallthru
          _
        %s371 = sand.u32 %s28, 1
        %s372 = scalar_lea.sflag [#allocation6], %s371
        %s373 = sand.u32 %s120, 1
        %s374 = smul.addr %s373, 64
        %s375 = scalar_lea.vmem [#allocation7], %s374
        // Predicated region
        $region49: #{tpu_custom_call.1} parent=39 // pred_check
          %p376 = pneg %p133
        $region50: #{tpu_custom_call.1} parent=39 // pred_check_branch
          %378 = sbr.rel (%p376) target = $region52
        $region51: #{tpu_custom_call.1} parent=39 // pred_region
          %379 = dma.done %s372, 1024
        $region52: #{tpu_custom_call.1} parent=39 // pred_fallthru
          _
        %s380 = sand.u32 %s28, 1
        %s381 = scalar_lea.sflag [#allocation9], %s380
        %s382 = sand.u32 %s154, 1
        %s383 = smul.addr %s382, 64
        %s384 = scalar_lea.vmem [#allocation8], %s383
        // Predicated region
        $region53: #{tpu_custom_call.1} parent=39 // pred_check
          %p385 = pneg %p167
        $region54: #{tpu_custom_call.1} parent=39 // pred_check_branch
          %387 = sbr.rel (%p385) target = $region56
        $region55: #{tpu_custom_call.1} parent=39 // pred_region
          %388 = dma.done %s381, 1024
        $region56: #{tpu_custom_call.1} parent=39 // pred_fallthru
          _
        // Predicated region
        $region57: #{tpu_custom_call.1} parent=39 // pred_check
          %p389 = pneg %p188
        $region58: #{tpu_custom_call.1} parent=39 // pred_check_branch
          %391 = sbr.rel (%p389) target = $region60
        $region59: #{tpu_custom_call.1} parent=39 // pred_region
          %392 = dma.done [#allocation9], 512
        $region60: #{tpu_custom_call.1} parent=39 // pred_fallthru
          _
        %s393 = sand.u32 %s54, 1
        %s394 = scalar_lea.sflag [#allocation3], %s393
        %s395 = sand.u32 %s54, 1
        %s396 = smul.addr %s395, 64
        %s397 = scalar_lea.vmem [#allocation2], %s396
        %p398 = pneg %p67
        %p399 = pneg %p64
        %s400 = sand.u32 %s28, 1
        %s401 = scalar_lea.sflag [#allocation6], %s400
        %s402 = sand.u32 %s86, 1
        %s403 = smul.addr %s402, 64
        %s404 = scalar_lea.vmem [#allocation5], %s403
        %p405 = pneg %p99
        %p406 = pneg %p96
        %s407 = sand.u32 %s28, 1
        %s408 = scalar_lea.sflag [#allocation6], %s407
        %s409 = sand.u32 %s120, 1
        %s410 = smul.addr %s409, 64
        %s411 = scalar_lea.vmem [#allocation7], %s410
        %p412 = pneg %p133
        %p413 = pneg %p130
        %s414 = sand.u32 %s28, 1
        %s415 = scalar_lea.sflag [#allocation9], %s414
        %s416 = sand.u32 %s154, 1
        %s417 = smul.addr %s416, 64
        %s418 = scalar_lea.vmem [#allocation8], %s417
        %p419 = pneg %p167
        %p420 = pneg %p164
        %p421 = pneg %p188
        %p422 = pneg %p185
        %p423 = pneg %p216
        %p424 = pneg %p213
        %s425 = sand.u32 %s203, 1
        %s426 = scalar_lea.sflag [#allocation4], %s425
        %s427 = sand.u32 %s203, 1
        %s428 = smul.addr %s427, 16
        %s429 = scalar_lea.vmem [#allocation11], %s428
        %p430 = scmp.lt.s32.totalorder %s33, 0
        %s431 = scalar_select %p430, %s33, 0
        %p432 = scmp.lt.s32.totalorder %s33, 0
        %s433 = scalar_select %p432, %s33, 0
        %s434 = ssub.s32 %s33, 1
        %p435 = scmp.gt.s32.totalorder %s434, 0
        %s436 = scalar_select %p435, %s434, 0
        %s437 = ssub.s32 %s33, 1
        %p438 = scmp.gt.s32.totalorder %s437, 0
        %s439 = scalar_select %p438, %s437, 0
        %v440 = vlaneseq
        %v441 = vand.u32 %v440, 127
        %vm442 = vcmp.eq.s32.totalorder %v441, 0
        %s443 = smul.u32 %s33, 128
        %v444 = vstv %s443
        %v445 = vadd.s32 %v444, %v441
        %vm446 = vcmp.lt.s32.totalorder %v445, 8
        %v447 = vld [vmem:[%s357] sm:$0xff]
        %v448 = vld [vmem:[%s357 + $0x8] sm:$0xff]
        %v449 = vld [vmem:[%s357 + $0x10] sm:$0xff]
        %v450 = vld [vmem:[%s357 + $0x18] sm:$0xff]
        %v451 = vld [vmem:[%s357 + $0x20] sm:$0xff]
        %v452 = vld [vmem:[%s357 + $0x28] sm:$0xff]
        %v453 = vld [vmem:[%s357 + $0x30] sm:$0xff]
        %v454 = vld [vmem:[%s357 + $0x38] sm:$0xff]
        %v455 = vld [vmem:[%s366] sm:$0xff]
        %v456 = vld [vmem:[%s366 + $0x8] sm:$0xff]
        %v457 = vld [vmem:[%s366 + $0x10] sm:$0xff]
        %v458 = vld [vmem:[%s366 + $0x18] sm:$0xff]
        %v459 = vld [vmem:[%s366 + $0x20] sm:$0xff]
        %v460 = vld [vmem:[%s366 + $0x28] sm:$0xff]
        %v461 = vld [vmem:[%s366 + $0x30] sm:$0xff]
        %v462 = vld [vmem:[%s366 + $0x38] sm:$0xff]
        %v463 = vmul.f32 %v447, %v455
        %v464 = vmul.f32 %v448, %v456
        %v465 = vmul.f32 %v449, %v457
        %v466 = vmul.f32 %v450, %v458
        %v467 = vmul.f32 %v451, %v459
        %v468 = vmul.f32 %v452, %v460
        %v469 = vmul.f32 %v453, %v461
        %v470 = vmul.f32 %v454, %v462
        %v471 = vsel %vm446, 1, 0
        %vm472 = vcmp.eq.s32.totalorder %v471, 1
        %v473 = vsel %vm472, %v463, 0.0
        %v474 = vsel %vm472, %v464, 0.0
        %v475 = vsel %vm472, %v465, 0.0
        %v476 = vsel %vm472, %v466, 0.0
        %v477 = vsel %vm472, %v467, 0.0
        %v478 = vsel %vm472, %v468, 0.0
        %v479 = vsel %vm472, %v469, 0.0
        %v480 = vsel %vm472, %v470, 0.0
        %v481 = vld [vmem:[#allocation10] sm:$0xff]
        %v482 = vld [vmem:[#allocation10 + $0x8] sm:$0xff]
        %v483 = vld [vmem:[#allocation10 + $0x10] sm:$0xff]
        %v484 = vld [vmem:[#allocation10 + $0x18] sm:$0xff]
        %vm485 = vcmask 523264
        %v487 = vsel %vm485, %v481, 0
        %v490 = vsel %vm485, %v482, 0
        %v493 = vsel %vm485, %v483, 0
        %v496 = vsel %vm485, %v484, 0
        %498 = vmatprep.subr.mxu0 0.0
        %499 = vmatpush1.msra.mxu0 %v473
        %500 = vmatprep.subr.mxu0 0.0
        %501 = vmatpush1.msra.mxu0 %v474
        %502 = vmatprep.subr.mxu0 0.0
        %503 = vmatpush1.msra.mxu0 %v475
        %504 = vmatprep.subr.mxu0 0.0
        %505 = vmatpush1.msra.mxu0 %v476
        %506 = vmatprep.subr.mxu0 0.0
        %507 = vmatpush1.msra.mxu0 %v477
        %508 = vmatprep.subr.mxu0 0.0
        %509 = vmatpush1.msra.mxu0 %v478
        %510 = vmatprep.subr.mxu0 0.0
        %511 = vmatpush1.msra.mxu0 %v479
        %512 = vmatprep.subr.mxu0 0.0
        %513 = vmatpush1.msra.mxu0 %v480
        %514 = vmatprep.subr.mxu0 0.0
        %515 = vmatpush1.msra.mxu0 0.0
        %516 = vmatprep.subr.mxu0 0.0
        %517 = vmatpush1.msra.mxu0 0.0
        %518 = vmatprep.subr.mxu0 0.0
        %519 = vmatpush1.msra.mxu0 0.0
        %520 = vmatprep.subr.mxu0 0.0
        %521 = vmatpush1.msra.mxu0 0.0
        %522 = vmatprep.subr.mxu0 0.0
        %523 = vmatpush1.msra.mxu0 0.0
        %524 = vmatprep.subr.mxu0 0.0
        %525 = vmatpush1.msra.mxu0 0.0
        %526 = vmatprep.subr.mxu0 0.0
        %527 = vmatpush1.msra.mxu0 0.0
        %528 = vmatprep.subr.mxu0 0.0
        %529 = vmatpush1.msra.mxu0 0.0
        %530 = vmatprep.subr.mxu0 0.0
        %531 = vmatpush1.msra.mxu0 0.0
        %532 = vmatprep.subr.mxu0 0.0
        %533 = vmatpush1.msra.mxu0 0.0
        %534 = vmatprep.subr.mxu0 0.0
        %535 = vmatpush1.msra.mxu0 0.0
        %536 = vmatprep.subr.mxu0 0.0
        %537 = vmatpush1.msra.mxu0 0.0
        %538 = vmatprep.subr.mxu0 0.0
        %539 = vmatpush1.msra.mxu0 0.0
        %540 = vmatprep.subr.mxu0 0.0
        %541 = vmatpush1.msra.mxu0 0.0
        %542 = vmatprep.subr.mxu0 0.0
        %543 = vmatpush1.msra.mxu0 0.0
        %544 = vmatprep.subr.mxu0 0.0
        %545 = vmatpush1.msra.mxu0 0.0
        %546 = vmatprep.subr.mxu0 0.0
        %547 = vmatpush1.msra.mxu0 0.0
        %548 = vmatprep.subr.mxu0 0.0
        %549 = vmatpush1.msra.mxu0 0.0
        %550 = vmatprep.subr.mxu0 0.0
        %551 = vmatpush1.msra.mxu0 0.0
        %552 = vmatprep.subr.mxu0 0.0
        %553 = vmatpush1.msra.mxu0 0.0
        %554 = vmatprep.subr.mxu0 0.0
        %555 = vmatpush1.msra.mxu0 0.0
        %556 = vmatprep.subr.mxu0 0.0
        %557 = vmatpush1.msra.mxu0 0.0
        %558 = vmatprep.subr.mxu0 0.0
        %559 = vmatpush1.msra.mxu0 0.0
        %560 = vmatprep.subr.mxu0 0.0
        %561 = vmatpush1.msra.mxu0 0.0
        %562 = vmatprep.mubr.f32.mxu0 0.0
        %563 = vmatmul.mubr.f32.gmra.mrb[0].mxu0 %v487
        %v564 = vpop.f32.mrb[0].mxu0
        %v565 = vadd.f32 0.0, %v564
        %v566 = vpop.f32.mrb[0].mxu0
        %567 = vmatprep.mubr.f32.mxu0 0.0
        %568 = vmatmul.mubr.f32.gmra.mrb[0].mxu0 %v490
        %v569 = vpop.f32.mrb[0].mxu0
        %v570 = vadd.f32 0.0, %v569
        %v571 = vpop.f32.mrb[0].mxu0
        %572 = vmatprep.mubr.f32.mxu0 0.0
        %573 = vmatmul.mubr.f32.gmra.mrb[0].mxu0 %v493
        %v574 = vpop.f32.mrb[0].mxu0
        %v575 = vadd.f32 0.0, %v574
        %v576 = vpop.f32.mrb[0].mxu0
        %577 = vmatprep.mubr.f32.mxu0 0.0
        %578 = vmatmul.mubr.f32.gmra.mrb[0].mxu0 %v496
        %v579 = vpop.f32.mrb[0].mxu0
        %v580 = vadd.f32 0.0, %v579
        %v581 = vpop.f32.mrb[0].mxu0
        %582 = vdwg.mxu0
        %583 = vrot.lane.b32.xlu0 %v575, 1
        %v584 = vpop.permute.xlu0 %583
        %585 = vrot.lane.b32.xlu0 %v580, 1
        %v586 = vpop.permute.xlu0 %585
        %v587 = vsel %vm442, 1, 0
        %vm588 = vcmp.eq.s32.totalorder %v587, 1
        %v589 = vsel %vm588, 0.0, %v584
        %v590 = vsel %vm588, 0.0, %v586
        %v591 = vld [vmem:[%s375] sm:$0xff]
        %v592 = vld [vmem:[%s375 + $0x8] sm:$0xff]
        %v593 = vld [vmem:[%s375 + $0x10] sm:$0xff]
        %v594 = vld [vmem:[%s375 + $0x18] sm:$0xff]
        %v595 = vld [vmem:[%s375 + $0x20] sm:$0xff]
        %v596 = vld [vmem:[%s375 + $0x28] sm:$0xff]
        %v597 = vld [vmem:[%s375 + $0x30] sm:$0xff]
        %v598 = vld [vmem:[%s375 + $0x38] sm:$0xff]
        %v599 = vld [vmem:[%s384] sm:$0xff]
        %v600 = vld [vmem:[%s384 + $0x8] sm:$0xff]
        %v601 = vld [vmem:[%s384 + $0x10] sm:$0xff]
        %v602 = vld [vmem:[%s384 + $0x18] sm:$0xff]
        %v603 = vld [vmem:[%s384 + $0x20] sm:$0xff]
        %v604 = vld [vmem:[%s384 + $0x28] sm:$0xff]
        %v605 = vld [vmem:[%s384 + $0x30] sm:$0xff]
        %v606 = vld [vmem:[%s384 + $0x38] sm:$0xff]
        %v607 = vmul.f32 %v591, %v599
        %v608 = vmul.f32 %v592, %v600
        %v609 = vmul.f32 %v593, %v601
        %v610 = vmul.f32 %v594, %v602
        %v611 = vmul.f32 %v595, %v603
        %v612 = vmul.f32 %v596, %v604
        %v613 = vmul.f32 %v597, %v605
        %v614 = vmul.f32 %v598, %v606
        %615 = vmatprep.subr.mxu0 0.0
        %616 = vmatpush1.msra.mxu0 %v607
        %617 = vmatprep.subr.mxu0 0.0
        %618 = vmatpush1.msra.mxu0 %v608
        %619 = vmatprep.subr.mxu0 0.0
        %620 = vmatpush1.msra.mxu0 %v609
        %621 = vmatprep.subr.mxu0 0.0
        %622 = vmatpush1.msra.mxu0 %v610
        %623 = vmatprep.subr.mxu0 0.0
        %624 = vmatpush1.msra.mxu0 %v611
        %625 = vmatprep.subr.mxu0 0.0
        %626 = vmatpush1.msra.mxu0 %v612
        %627 = vmatprep.subr.mxu0 0.0
        %628 = vmatpush1.msra.mxu0 %v613
        %629 = vmatprep.subr.mxu0 0.0
        %630 = vmatpush1.msra.mxu0 %v614
        %631 = vmatprep.subr.mxu0 0.0
        %632 = vmatpush1.msra.mxu0 0.0
        %633 = vmatprep.subr.mxu0 0.0
        %634 = vmatpush1.msra.mxu0 0.0
        %635 = vmatprep.subr.mxu0 0.0
        %636 = vmatpush1.msra.mxu0 0.0
        %637 = vmatprep.subr.mxu0 0.0
        %638 = vmatpush1.msra.mxu0 0.0
        %639 = vmatprep.subr.mxu0 0.0
        %640 = vmatpush1.msra.mxu0 0.0
        %641 = vmatprep.subr.mxu0 0.0
        %642 = vmatpush1.msra.mxu0 0.0
        %643 = vmatprep.subr.mxu0 0.0
        %644 = vmatpush1.msra.mxu0 0.0
        %645 = vmatprep.subr.mxu0 0.0
        %646 = vmatpush1.msra.mxu0 0.0
        %647 = vmatprep.subr.mxu0 0.0
        %648 = vmatpush1.msra.mxu0 0.0
        %649 = vmatprep.subr.mxu0 0.0
        %650 = vmatpush1.msra.mxu0 0.0
        %651 = vmatprep.subr.mxu0 0.0
        %652 = vmatpush1.msra.mxu0 0.0
        %653 = vmatprep.subr.mxu0 0.0
        %654 = vmatpush1.msra.mxu0 0.0
        %655 = vmatprep.subr.mxu0 0.0
        %656 = vmatpush1.msra.mxu0 0.0
        %657 = vmatprep.subr.mxu0 0.0
        %658 = vmatpush1.msra.mxu0 0.0
        %659 = vmatprep.subr.mxu0 0.0
        %660 = vmatpush1.msra.mxu0 0.0
        %661 = vmatprep.subr.mxu0 0.0
        %662 = vmatpush1.msra.mxu0 0.0
        %663 = vmatprep.subr.mxu0 0.0
        %664 = vmatpush1.msra.mxu0 0.0
        %665 = vmatprep.subr.mxu0 0.0
        %666 = vmatpush1.msra.mxu0 0.0
        %667 = vmatprep.subr.mxu0 0.0
        %668 = vmatpush1.msra.mxu0 0.0
        %669 = vmatprep.subr.mxu0 0.0
        %670 = vmatpush1.msra.mxu0 0.0
        %671 = vmatprep.subr.mxu0 0.0
        %672 = vmatpush1.msra.mxu0 0.0
        %673 = vmatprep.subr.mxu0 0.0
        %674 = vmatpush1.msra.mxu0 0.0
        %675 = vmatprep.subr.mxu0 0.0
        %676 = vmatpush1.msra.mxu0 0.0
        %677 = vmatprep.subr.mxu0 0.0
        %678 = vmatpush1.msra.mxu0 0.0
        %679 = vmatprep.mubr.f32.mxu0 0.0
        %680 = vmatmul.mubr.f32.gmra.mrb[0].mxu0 %v487
        %v681 = vpop.f32.mrb[0].mxu0
        %v682 = vpop.f32.mrb[0].mxu0
        %683 = vmatprep.mubr.f32.mxu0 0.0
        %684 = vmatmul.mubr.f32.gmra.mrb[0].mxu0 %v490
        %v685 = vpop.f32.mrb[0].mxu0
        %v686 = vpop.f32.mrb[0].mxu0
        %687 = vmatprep.mubr.f32.mxu0 0.0
        %688 = vmatmul.mubr.f32.gmra.mrb[0].mxu0 %v493
        %v689 = vpop.f32.mrb[0].mxu0
        %v690 = vadd.f32 0.0, %v689
        %v691 = vpop.f32.mrb[0].mxu0
        %692 = vmatprep.mubr.f32.mxu0 0.0
        %693 = vmatmul.mubr.f32.gmra.mrb[0].mxu0 %v496
        %v694 = vpop.f32.mrb[0].mxu0
        %v695 = vadd.f32 0.0, %v694
        %v696 = vpop.f32.mrb[0].mxu0
        %697 = vdwg.mxu0
        %p698 = scmp.gt.s32.totalorder %s33, 0
        %s699 = scalar_select %p698, 1, 0
        %v700 = vstv %s699
        %vm701 = vcmp.eq.s32.totalorder %v700, 1
        %v702 = vsel %vm701, %v690, 0.0
        %v703 = vsel %vm701, %v695, 0.0
        %v704 = vadd.f32 %v565, %v589
        %v705 = vadd.f32 %v570, %v590
        %707 = vset.pattern.permute.xlu0 127
        %708 = vperm.xlu0 %707, %v702
        %v709 = vpop.permute.xlu0 %708
        %712 = vset.pattern.permute.xlu0 127
        %713 = vperm.xlu0 %712, %v703
        %v714 = vpop.permute.xlu0 %713
        %v716 = vsel %vm588, %v709, 0.0
        %v717 = vsel %vm588, %v714, 0.0
        %v718 = vadd.f32 %v704, %v716
        %v719 = vadd.f32 %v705, %v717
        %720 = vst [vmem:[%s429] sm:$0xff] %v718
        %721 = vst [vmem:[%s429 + $0x8] sm:$0xff] %v719
        %s722 = sand.u32 %s203, 1
        %s723 = scalar_lea.sflag [#allocation4], %s722
        %s724 = sand.u32 %s203, 1
        %s725 = smul.addr %s724, 16
        %s726 = scalar_lea.vmem [#allocation11], %s725
        // Predicated region
        $region61: #{tpu_custom_call.1} parent=39 // pred_check
          %p727 = pneg %p213
        $region62: #{tpu_custom_call.1} parent=39 // pred_check_branch
          %729 = sbr.rel (%p727) target = $region64
        $region63: #{tpu_custom_call.1} parent=39 // pred_region
          %s731 = ssub.s32 256, 256
          %732 = vsyncadd %s723, %s731
          %s733 = smul.addr %s32, 2
          %s734 = sadd.s32 %s33, %s733
          %s735 = smul.addr %s734, 128
          %s736 = scalar_lea.hbm %s5, %s735
          %s737 = sshll.u32 %s726, 4
          %s738 = int_to_ptr.vmem [resolvable:$true] %s737
          %743 = dma.vmem_to_hbm [thread:$0]  %s738, 256, %s736, %s723, 128, 128, 8
        $region64: #{tpu_custom_call.1} parent=39 // pred_fallthru
          _
      $region40: #{tpu_custom_call.1} parent=5 // pred_fallthru
        _
      %p744 = scmp.le.s32.totalorder 2, %s23
      // Predicated region
      $region65: #{tpu_custom_call.1} parent=5 // pred_check
        %p745 = pneg %p744
      $region66: #{tpu_custom_call.1} parent=5 // pred_check_branch
        %747 = sbr.rel (%p745) target = $region68
      $region67: #{tpu_custom_call.1} parent=5 // pred_region
        %s748 = ssub.s32 %s23, 2
        // Predicated region
        $region69: #{tpu_custom_call.1} parent=67 // pred_check
          %p749 = pneg %p219
        $region70: #{tpu_custom_call.1} parent=67 // pred_check_branch
          %751 = sbr.rel (%p749) target = $region72
        $region71: #{tpu_custom_call.1} parent=67 // pred_region
          %s752 = sand.u32 %s204, 1
          %s753 = scalar_lea.sflag [#allocation4], %s752
          %s754 = sand.u32 %s204, 1
          %s755 = smul.addr %s754, 16
          %s756 = scalar_lea.vmem [#allocation11], %s755
          %757 = dma.done %s753, 256
        $region72: #{tpu_custom_call.1} parent=67 // pred_fallthru
          _
      $region68: #{tpu_custom_call.1} parent=5 // pred_fallthru
        _
    $region6: #{tpu_custom_call.1} parent=1 // loop_footer
      %s27 = sadd.s32 1, %s23
    $region7: #{tpu_custom_call.1} parent=1 // loop_footer_branch
      %22 = sbr.rel target = $region3
    $region8: #{tpu_custom_call.1} parent=1 // loop_exit
      _
    %758 = vsyncpa [#allocation3], 1
    %s759 = scalar_lea.sflag [#allocation3], 1
    %760 = vsyncpa %s759, 1
    %761 = vsyncpa [#allocation6], 1
    %s762 = scalar_lea.sflag [#allocation6], 1
    %763 = vsyncpa %s762, 1
    %764 = vsyncpa [#allocation9], 1
    %s765 = scalar_lea.sflag [#allocation9], 1
    %766 = vsyncpa %s765, 1
    %767 = vsyncpa [#allocation4], 1
    %s768 = scalar_lea.sflag [#allocation4], 1
    %769 = vsyncpa %s768, 1

</llo_original>
